<compile_context>
chip_gen: v7x
topology: tpu7x:2x2x1
jax: 0.10.0
libtpu: 0.0.40
codegen_flags: <defaults>
</compile_context>

<pallas_src>
import functools

import jax
import jax.numpy as jnp
from jax.experimental import pallas as pl
from jax.experimental.pallas import tpu as pltpu


def _round_up(x, m):
    return ((x + m - 1) // m) * m


def _make_critic_kernel(n_hidden, has_action):
    """Kernel for an MLP with `n_hidden` (Linear+ReLU) layers + Linear(., 1)."""

    def kernel(*refs):
        out_ref = refs[-1]
        if has_action:
            s_ref, a_ref = refs[0], refs[1]
            p = refs[2:-1]
        else:
            s_ref, a_ref = refs[0], None
            p = refs[1:-1]

        def dot32(x, w_ref):
            return jnp.dot(x, w_ref[...], preferred_element_type=jnp.float32)

        def rowdot(x, w_row_ref):
            # x @ w_col with the (K, 1) weight passed pre-transposed as a
            # (1, K) row: lane multiply (VPU) + cross-lane reduce (XLU)
            # instead of an N=1 MXU matmul.
            return jnp.sum(x * w_row_ref[...], axis=-1, keepdims=True)

        if n_hidden == 0:
            # Degenerate MLP (hidden_dims == []): single Linear(in, 1).
            if has_action:
                ws, wa, b = p
                out = rowdot(s_ref[...], ws) + rowdot(a_ref[...], wa) + b[...]
            else:
                ws, b = p
                out = rowdot(s_ref[...], ws) + b[...]
        else:
            # Hidden layer 0: concat fused as a split matmul.
            if has_action:
                w0s, w0a, b0 = p[0], p[1], p[2]
                rest = p[3:]
                h = dot32(s_ref[...], w0s) + dot32(a_ref[...], w0a) + b0[...]
            else:
                w0s, b0 = p[0], p[1]
                rest = p[2:]
                h = dot32(s_ref[...], w0s) + b0[...]
            h = jnp.maximum(h, 0.0)

            # Hidden layers 1 .. n_hidden-1.
            for i in range(n_hidden - 1):
                w, b = rest[2 * i], rest[2 * i + 1]
                h = jnp.maximum(dot32(h, w) + b[...], 0.0)

            # Final Linear(last_dim, 1) on VPU/XLU.
            w_row, b_last = rest[-2], rest[-1]
            out = rowdot(h, w_row) + b_last[...]

        # Output block stays (TB, 1): a lane-dense (1, TB) writeback would need
        # an in-kernel sublane->lane relayout of the reduce result, which costs
        # more than the handful of masked stores it saves at out_dim == 1.
        out_ref[...] = out.astype(out_ref.dtype)

    return kernel


def init_critic_params(key, s_dim, a_dim, hidden_dims):
    """Parameters matching the PyTorch module.

    Hidden Linear layers: U(-1/sqrt(fan_in), 1/sqrt(fan_in))  (PyTorch default)
    Final Linear layer  : U(-0.003, 0.003) for both weight and bias.

    Weights are stored transposed as (in_dim, out_dim); biases as (1, out_dim).
    NOTE(perf): if hidden_dims are ever scaled up, prefer multiples of 128
    (256 on v6e/v7x) and bf16 weights/activations with f32 accumulation.
    """
    dims = [s_dim + a_dim] + list(hidden_dims) + [1]
    params = []
    for i in range(len(dims) - 1):
        in_d, out_d = dims[i], dims[i + 1]
        key, kw, kb = jax.random.split(key, 3)
        bound = 0.003 if i == len(dims) - 2 else 1.0 / float(in_d) ** 0.5
        w = jax.random.uniform(kw, (in_d, out_d), jnp.float32, -bound, bound)
        b = jax.random.uniform(kb, (1, out_d), jnp.float32, -bound, bound)
        params.append((w, b))
    return params


def prepare_critic_params(params, s_feat, a_feat):
    """Re-pack params for the kernel (done ONCE, outside the hot path):
      * split the first-layer weight into state/action parts (concat fusion),
      * transpose the final-layer weight to a (1, last_dim) row (VPU reduce).
    Returns a flat tuple: (w0_s, [w0_a,] b0, w1, b1, ..., w_last_row, b_last).
    """
    n_layers = len(params)
    flat = []
    for i, (w, b) in enumerate(params):
        is_first = i == 0
        is_last = i == n_layers - 1
        if is_first and a_feat > 0:
            w_s, w_a = w[:s_feat], w[s_feat:]
            if is_last:
                w_s, w_a = w_s.T, w_a.T
            flat += [w_s, w_a, b]
        else:
            flat += [w.T if is_last else w, b]
    return tuple(flat)


@functools.partial(jax.jit, static_argnums=(3,))
def critic_forward(s, a, kernel_params, n_hidden):
    """Critic forward pass.  `kernel_params` comes from prepare_critic_params.

    NOTE(perf): if the critic is evaluated many times per training step,
    batch those calls into one forward over a larger B rather than looping
    this function -- per-call dispatch overhead dwarfs the math of a
    20->32->32->1 MLP.
    """
    B = s.shape[0]
    s2d = s.reshape(B, -1)                       # metadata-only reshape
    a2d = a.reshape(B, -1) if a is not None else None
    has_action = a2d is not None

    # Batch tile: multiple of 8 (f32 sublane), capped at 512 (MXU fill
    # amortization while keeping VMEM tiny on all of v5e/v6e/v7x).
    tb = min(512, _round_up(B, 8))
    grid = (pl.cdiv(B, tb),)

    batch_map = lambda i: (i, 0)
    const_map = lambda i: (0, 0)

    inputs = [s2d]
    in_specs = [pl.BlockSpec((tb, s2d.shape[1]), batch_map)]
    if has_action:
        inputs.append(a2d)
        in_specs.append(pl.BlockSpec((tb, a2d.shape[1]), batch_map))
    for prm in kernel_params:
        inputs.append(prm)
        # Full-array block, constant block index => weight stays resident in
        # VMEM across grid steps (no per-step re-DMA).
        in_specs.append(pl.BlockSpec(prm.shape, const_map))

    kernel = _make_critic_kernel(n_hidden, has_action)

    return pl.pallas_call(
        kernel,
        out_shape=jax.ShapeDtypeStruct((B, 1), jnp.float32),
        grid=grid,
        in_specs=in_specs,
        out_specs=pl.BlockSpec((tb, 1), batch_map),
        compiler_params=pltpu.CompilerParams(
            # Batch tiles are independent: lets v7x split the grid across both
            # TensorCores and gives the pipeline full reordering freedom.
            dimension_semantics=("parallel",),
        ),
    )(*inputs)


def critic_forward_ref(s, a, params):
    """Pure-JAX reference for correctness checking."""
    B = s.shape[0]
    x = s.reshape(B, -1)
    if a is not None:
        x = jnp.concatenate([x, a.reshape(B, -1)], axis=1)
    for i, (w, b) in enumerate(params):
        x = jnp.dot(x, w, precision=jax.lax.Precision.HIGHEST) + b
        if i != len(params) - 1:
            x = jnp.maximum(x, 0.0)
    return x


if __name__ == "__main__":
    # Shapes consistent with the module's forward:
    #   s: (batch, s_dim), a: (batch, a_dim), hidden_dims=[32, 32]
    batch, s_dim, a_dim = 2, 16, 4
    hidden_dims = [32, 32]

    key = jax.random.PRNGKey(0)
    k_s, k_a, k_p = jax.random.split(key, 3)
    s = jax.random.normal(k_s, (batch, s_dim), jnp.float32)
    a = jax.random.normal(k_a, (batch, a_dim), jnp.float32)

    params = init_critic_params(k_p, s_dim, a_dim, hidden_dims)
    kparams = prepare_critic_params(params, s_dim, a_dim)

    # Small batch: single grid step (batch implicitly padded to 8 sublanes).
    value = jax.block_until_ready(critic_forward(s, a, kparams, len(hidden_dims)))
    value_ref = critic_forward_ref(s, a, params)
    assert value.shape == (batch, 1)
    assert jnp.allclose(value, value_ref, atol=1e-5, rtol=1e-5)

    # Larger batch: exercises the multi-tile parallel grid (grid=(2,), TB=512,
    # last tile partially out of bounds -> masked writeback).
    big_b = 1000
    k_s2, k_a2 = jax.random.split(jax.random.PRNGKey(1))
    s_big = jax.random.normal(k_s2, (big_b, s_dim), jnp.float32)
    a_big = jax.random.normal(k_a2, (big_b, a_dim), jnp.float32)
    value_big = jax.block_until_ready(
        critic_forward(s_big, a_big, kparams, len(hidden_dims))
    )
    value_big_ref = critic_forward_ref(s_big, a_big, params)
    assert value_big.shape == (big_b, 1)
    assert jnp.allclose(value_big, value_big_ref, atol=1e-4, rtol=1e-4)

    print("KERNEL_OK")
</pallas_src>

<mosaic_0001>
module attributes {stable_mosaic.version = 11 : i64} {
  func.func @kernel(%arg0: i32, %arg1: memref<8x16xf32, #tpu.memory_space<vmem>>, %arg2: memref<8x4xf32, #tpu.memory_space<vmem>>, %arg3: memref<16x32xf32, #tpu.memory_space<vmem>>, %arg4: memref<4x32xf32, #tpu.memory_space<vmem>>, %arg5: memref<1x32xf32, #tpu.memory_space<vmem>>, %arg6: memref<32x32xf32, #tpu.memory_space<vmem>>, %arg7: memref<1x32xf32, #tpu.memory_space<vmem>>, %arg8: memref<1x32xf32, #tpu.memory_space<vmem>>, %arg9: memref<1x1xf32, #tpu.memory_space<vmem>>, %arg10: memref<8x1xf32, #tpu.memory_space<vmem>>) attributes {dimension_semantics = [#tpu.dimension_semantics<parallel>], iteration_bounds = array<i64: 1>, scalar_prefetch = 0 : i64, scratch_operands = 0 : i64, tpu.core_type = #tpu.core_type<tc>, window_params = [{transform_indices = @transform_0, window_bounds = array<i64: 8, 16>}, {transform_indices = @transform_1, window_bounds = array<i64: 8, 4>}, {pipeline_mode = #tpu.pipeline_mode<synchronous>, transform_indices = @transform_2, window_bounds = array<i64: 16, 32>}, {pipeline_mode = #tpu.pipeline_mode<synchronous>, transform_indices = @transform_3, window_bounds = array<i64: 4, 32>}, {pipeline_mode = #tpu.pipeline_mode<synchronous>, transform_indices = @transform_4, window_bounds = array<i64: 1, 32>}, {pipeline_mode = #tpu.pipeline_mode<synchronous>, transform_indices = @transform_5, window_bounds = array<i64: 32, 32>}, {pipeline_mode = #tpu.pipeline_mode<synchronous>, transform_indices = @transform_6, window_bounds = array<i64: 1, 32>}, {pipeline_mode = #tpu.pipeline_mode<synchronous>, transform_indices = @transform_7, window_bounds = array<i64: 1, 32>}, {pipeline_mode = #tpu.pipeline_mode<synchronous>, transform_indices = @transform_8, window_bounds = array<i64: 1, 1>}, {transform_indices = @transform_9, window_bounds = array<i64: 8, 1>}]} {
    %c0 = arith.constant 0 : index
    %c0_0 = arith.constant 0 : index
    %0 = vector.load %arg1[%c0, %c0_0] : memref<8x16xf32, #tpu.memory_space<vmem>>, vector<8x16xf32>
    %c0_1 = arith.constant 0 : index
    %c0_2 = arith.constant 0 : index
    %1 = vector.load %arg3[%c0_1, %c0_2] : memref<16x32xf32, #tpu.memory_space<vmem>>, vector<16x32xf32>
    %cst = arith.constant dense<0.000000e+00> : vector<8x32xf32>
    %2 = tpu.matmul %0, %1, %cst {dimension_numbers = #tpu.dot_dimension_numbers<[1], [0], [0], [1], [0, 0, 1, 1], [], []>} : vector<8x16xf32>, vector<16x32xf32>, vector<8x32xf32> -> vector<8x32xf32>
    %c0_3 = arith.constant 0 : index
    %c0_4 = arith.constant 0 : index
    %3 = vector.load %arg2[%c0_3, %c0_4] : memref<8x4xf32, #tpu.memory_space<vmem>>, vector<8x4xf32>
    %c0_5 = arith.constant 0 : index
    %c0_6 = arith.constant 0 : index
    %4 = vector.load %arg4[%c0_5, %c0_6] : memref<4x32xf32, #tpu.memory_space<vmem>>, vector<4x32xf32>
    %cst_7 = arith.constant dense<0.000000e+00> : vector<8x32xf32>
    %5 = tpu.matmul %3, %4, %cst_7 {dimension_numbers = #tpu.dot_dimension_numbers<[1], [0], [0], [1], [0, 0, 1, 1], [], []>} : vector<8x4xf32>, vector<4x32xf32>, vector<8x32xf32> -> vector<8x32xf32>
    %6 = arith.addf %2, %5 : vector<8x32xf32>
    %c0_8 = arith.constant 0 : index
    %c0_9 = arith.constant 0 : index
    %7 = vector.load %arg5[%c0_8, %c0_9] : memref<1x32xf32, #tpu.memory_space<vmem>>, vector<1x32xf32>
    %8 = vector.broadcast %7 : vector<1x32xf32> to vector<8x32xf32>
    %9 = arith.addf %6, %8 : vector<8x32xf32>
    %cst_10 = arith.constant 0.000000e+00 : f32
    %10 = vector.broadcast %cst_10 : f32 to vector<8x32xf32>
    %11 = arith.maximumf %9, %10 : vector<8x32xf32>
    %c0_11 = arith.constant 0 : index
    %c0_12 = arith.constant 0 : index
    %12 = vector.load %arg6[%c0_11, %c0_12] : memref<32x32xf32, #tpu.memory_space<vmem>>, vector<32x32xf32>
    %cst_13 = arith.constant dense<0.000000e+00> : vector<8x32xf32>
    %13 = tpu.matmul %11, %12, %cst_13 {dimension_numbers = #tpu.dot_dimension_numbers<[1], [0], [0], [1], [0, 0, 1, 1], [], []>} : vector<8x32xf32>, vector<32x32xf32>, vector<8x32xf32> -> vector<8x32xf32>
    %c0_14 = arith.constant 0 : index
    %c0_15 = arith.constant 0 : index
    %14 = vector.load %arg7[%c0_14, %c0_15] : memref<1x32xf32, #tpu.memory_space<vmem>>, vector<1x32xf32>
    %15 = vector.broadcast %14 : vector<1x32xf32> to vector<8x32xf32>
    %16 = arith.addf %13, %15 : vector<8x32xf32>
    %cst_16 = arith.constant 0.000000e+00 : f32
    %17 = vector.broadcast %cst_16 : f32 to vector<8x32xf32>
    %18 = arith.maximumf %16, %17 : vector<8x32xf32>
    %c0_17 = arith.constant 0 : index
    %c0_18 = arith.constant 0 : index
    %19 = vector.load %arg8[%c0_17, %c0_18] : memref<1x32xf32, #tpu.memory_space<vmem>>, vector<1x32xf32>
    %20 = vector.broadcast %19 : vector<1x32xf32> to vector<8x32xf32>
    %21 = arith.mulf %18, %20 : vector<8x32xf32>
    %cst_19 = arith.constant dense<0.000000e+00> : vector<8xf32>
    %22 = vector.multi_reduction <add>, %21, %cst_19 [1] : vector<8x32xf32> to vector<8xf32>
    %23 = vector.shape_cast %22 : vector<8xf32> to vector<8x1xf32>
    %c0_20 = arith.constant 0 : index
    %c0_21 = arith.constant 0 : index
    %24 = vector.load %arg9[%c0_20, %c0_21] : memref<1x1xf32, #tpu.memory_space<vmem>>, vector<1x1xf32>
    %25 = vector.broadcast %24 : vector<1x1xf32> to vector<8x1xf32>
    %26 = arith.addf %23, %25 : vector<8x1xf32>
    %c0_22 = arith.constant 0 : index
    %c0_23 = arith.constant 0 : index
    %27 = vector.load %arg10[%c0_22, %c0_23] : memref<8x1xf32, #tpu.memory_space<vmem>>, vector<8x1xf32>
    tpu.vector_store %arg10[%c0_22, %c0_23], %26 {strides = array<i32>} : memref<8x1xf32, #tpu.memory_space<vmem>>, vector<8x1xf32>,
    return
  }
  func.func @transform_0(%arg0: i32) -> (i32, i32) {
    %c0_i32 = arith.constant 0 : i32
    %c0_i32_0 = arith.constant 0 : i32
    return %arg0, %c0_i32 : i32, i32
  }
  func.func @transform_1(%arg0: i32) -> (i32, i32) {
    %c0_i32 = arith.constant 0 : i32
    %c0_i32_0 = arith.constant 0 : i32
    return %arg0, %c0_i32 : i32, i32
  }
  func.func @transform_2(%arg0: i32) -> (i32, i32) {
    %c0_i32 = arith.constant 0 : i32
    %c0_i32_0 = arith.constant 0 : i32
    %c0_i32_1 = arith.constant 0 : i32
    return %c0_i32, %c0_i32_0 : i32, i32
  }
  func.func @transform_3(%arg0: i32) -> (i32, i32) {
    %c0_i32 = arith.constant 0 : i32
    %c0_i32_0 = arith.constant 0 : i32
    %c0_i32_1 = arith.constant 0 : i32
    return %c0_i32, %c0_i32_0 : i32, i32
  }
  func.func @transform_4(%arg0: i32) -> (i32, i32) {
    %c0_i32 = arith.constant 0 : i32
    %c0_i32_0 = arith.constant 0 : i32
    %c0_i32_1 = arith.constant 0 : i32
    return %c0_i32, %c0_i32_0 : i32, i32
  }
  func.func @transform_5(%arg0: i32) -> (i32, i32) {
    %c0_i32 = arith.constant 0 : i32
    %c0_i32_0 = arith.constant 0 : i32
    %c0_i32_1 = arith.constant 0 : i32
    return %c0_i32, %c0_i32_0 : i32, i32
  }
  func.func @transform_6(%arg0: i32) -> (i32, i32) {
    %c0_i32 = arith.constant 0 : i32
    %c0_i32_0 = arith.constant 0 : i32
    %c0_i32_1 = arith.constant 0 : i32
    return %c0_i32, %c0_i32_0 : i32, i32
  }
  func.func @transform_7(%arg0: i32) -> (i32, i32) {
    %c0_i32 = arith.constant 0 : i32
    %c0_i32_0 = arith.constant 0 : i32
    %c0_i32_1 = arith.constant 0 : i32
    return %c0_i32, %c0_i32_0 : i32, i32
  }
  func.func @transform_8(%arg0: i32) -> (i32, i32) {
    %c0_i32 = arith.constant 0 : i32
    %c0_i32_0 = arith.constant 0 : i32
    %c0_i32_1 = arith.constant 0 : i32
    return %c0_i32, %c0_i32_0 : i32, i32
  }
  func.func @transform_9(%arg0: i32) -> (i32, i32) {
    %c0_i32 = arith.constant 0 : i32
    %c0_i32_0 = arith.constant 0 : i32
    return %arg0, %c0_i32 : i32, i32
  }
}

</mosaic_0001>

<llo_original>
// kernel: critic_forward.1
$region0: #{critic_forward.1}
  #allocation0 [shape = 'u32[]', space=smem, size = 0x4, offset = 0x4, fixed_abs, tag = 'smem constant byte address 0x4 - core index']
  #allocation1 [shape = 'u32[144,128]{1,0:T(1,128)}', space=vmem, size = 0x12000, scoped, tag = 'internal scratch']
  #allocation2 [shape = 'f32[1,1]{1,0:T(1,128)S(1)}', space=vmem, size = 0x200, scoped, tag = 'scoped memory for critic_forward.1']
  %s0 = inlined_call_operand.vmem [shape: f32[2,16], index: 0, kind: input, shape index: {}]
  %s1 = inlined_call_operand.hbm [shape: f32[2,4], index: 1, kind: input, shape index: {}]
  %s2 = inlined_call_operand.hbm [shape: f32[16,32], index: 2, kind: input, shape index: {}]
  %s3 = inlined_call_operand.vmem [shape: f32[4,32], index: 3, kind: input, shape index: {}]
  %s4 = inlined_call_operand.vmem [shape: f32[1,32], index: 4, kind: input, shape index: {}]
  %s5 = inlined_call_operand.hbm [shape: f32[32,32], index: 5, kind: input, shape index: {}]
  %s6 = inlined_call_operand.vmem [shape: f32[1,32], index: 6, kind: input, shape index: {}]
  %s7 = inlined_call_operand.vmem [shape: f32[1,32], index: 7, kind: input, shape index: {}]
  %s8 = inlined_call_operand.<no memory space> [shape: f32[1,1], index: 8, kind: input, shape index: {}]
  %s9 = inlined_call_operand.vmem [shape: f32[2,1], index: 9, kind: output, shape index: {}]
  %s10 = sld [smem:[#allocation0]]
  $region88: #{critic_forward.1} parent=0
    _
  %s12 = ssub.s32 1, %s10
  %s13 = scalar_select 0, %s12, %s10
  %v14 = vstv %s8
  %15 = vst [vmem:[#allocation2] sm:$0x1] %v14
  $region1: #{critic_forward.1} parent=0
    #allocation3 [shape = 'u8[4096]{0}', space=vmem, size = 0x1000, scoped, tag = 'input window, operand 1, single buffered']
    #allocation4 [shape = 's32[1]{0}', space=sflag, size = 0x4, scoped, tag = 'scoped memory for critic_forward.1']
    #allocation5 [shape = 'u8[8192]{0}', space=vmem, size = 0x2000, scoped, tag = 'input window, operand 2, single buffered']
    #allocation6 [shape = 's32[1]{0}', space=sflag, size = 0x4, scoped, tag = 'scoped memory for critic_forward.1']
    #allocation7 [shape = 'u8[16384]{0}', space=vmem, size = 0x4000, scoped, tag = 'input window, operand 5, single buffered']
    #allocation8 [shape = 'u8[4096]{0}', space=vmem, size = 0x1000, scoped, tag = 'output window, operand 0, single buffered']
    %16 = vsyncpa [#allocation4], 0
    %17 = vsyncpa [#allocation6], 0
    // Predicated region
    $region2: #{critic_forward.1} parent=1 // pred_check
      _
    $region3: #{critic_forward.1} parent=1 // pred_check_branch
      %19 = sbr.rel (0) target = $region5
    $region4: #{critic_forward.1} parent=1 // pred_region
      _
    $region5: #{critic_forward.1} parent=1 // pred_fallthru
      _
    // Predicated region
    $region6: #{critic_forward.1} parent=1 // pred_check
      _
    $region7: #{critic_forward.1} parent=1 // pred_check_branch
      %21 = sbr.rel (0) target = $region9
    $region8: #{critic_forward.1} parent=1 // pred_region
      %s23 = ssub.s32 128, 32
      %24 = vsyncadd [#allocation4], %s23
      %s25 = sshll.u32 [#allocation3], 4
      %s26 = int_to_ptr.vmem [resolvable:$true] %s25
      %31 = dma.hbm_to_vmem [thread:$0]  %s1, 32, %s26, [#allocation4], 32, 32, 2
    $region9: #{critic_forward.1} parent=1 // pred_fallthru
      _
    // Predicated region
    $region10: #{critic_forward.1} parent=1 // pred_check
      _
    $region11: #{critic_forward.1} parent=1 // pred_check_branch
      %33 = sbr.rel (0) target = $region13
    $region12: #{critic_forward.1} parent=1 // pred_region
      %s35 = ssub.s32 256, 256
      %36 = vsyncadd [#allocation6], %s35
      %s37 = sshll.u32 [#allocation5], 4
      %s38 = int_to_ptr.vmem [resolvable:$true] %s37
      %43 = dma.hbm_to_vmem [thread:$0]  %s2, 256, %s38, [#allocation6], 128, 128, 8
    $region13: #{critic_forward.1} parent=1 // pred_fallthru
      _
    // Predicated region
    $region14: #{critic_forward.1} parent=1 // pred_check
      _
    $region15: #{critic_forward.1} parent=1 // pred_check_branch
      %45 = sbr.rel (0) target = $region17
    $region16: #{critic_forward.1} parent=1 // pred_region
      _
    $region17: #{critic_forward.1} parent=1 // pred_fallthru
      _
    // Predicated region
    $region18: #{critic_forward.1} parent=1 // pred_check
      _
    $region19: #{critic_forward.1} parent=1 // pred_check_branch
      %47 = sbr.rel (0) target = $region21
    $region20: #{critic_forward.1} parent=1 // pred_region
      _
    $region21: #{critic_forward.1} parent=1 // pred_fallthru
      _
    // Predicated region
    $region22: #{critic_forward.1} parent=1 // pred_check
      _
    $region23: #{critic_forward.1} parent=1 // pred_check_branch
      %49 = sbr.rel (0) target = $region25
    $region24: #{critic_forward.1} parent=1 // pred_region
      %s51 = ssub.s32 512, 512
      %52 = vsyncadd [#allocation6], %s51
      %s53 = sshll.u32 [#allocation7], 4
      %s54 = int_to_ptr.vmem [resolvable:$true] %s53
      %59 = dma.hbm_to_vmem [thread:$0]  %s5, 512, %s54, [#allocation6], 128, 128, 8
    $region25: #{critic_forward.1} parent=1 // pred_fallthru
      _
    // Predicated region
    $region26: #{critic_forward.1} parent=1 // pred_check
      _
    $region27: #{critic_forward.1} parent=1 // pred_check_branch
      %61 = sbr.rel (0) target = $region29
    $region28: #{critic_forward.1} parent=1 // pred_region
      _
    $region29: #{critic_forward.1} parent=1 // pred_fallthru
      _
    // Predicated region
    $region30: #{critic_forward.1} parent=1 // pred_check
      _
    $region31: #{critic_forward.1} parent=1 // pred_check_branch
      %63 = sbr.rel (0) target = $region33
    $region32: #{critic_forward.1} parent=1 // pred_region
      _
    $region33: #{critic_forward.1} parent=1 // pred_fallthru
      _
    // Predicated region
    $region34: #{critic_forward.1} parent=1 // pred_check
      _
    $region35: #{critic_forward.1} parent=1 // pred_check_branch
      %65 = sbr.rel (0) target = $region37
    $region36: #{critic_forward.1} parent=1 // pred_region
      _
    $region37: #{critic_forward.1} parent=1 // pred_fallthru
      _
    // Predicated region
    $region38: #{critic_forward.1} parent=1 // pred_check
      _
    $region39: #{critic_forward.1} parent=1 // pred_check_branch
      %67 = sbr.rel (0) target = $region41
    $region40: #{critic_forward.1} parent=1 // pred_region
      %68 = dma.done [#allocation4], 128
    $region41: #{critic_forward.1} parent=1 // pred_fallthru
      _
    // Predicated region
    $region42: #{critic_forward.1} parent=1 // pred_check
      _
    $region43: #{critic_forward.1} parent=1 // pred_check_branch
      %70 = sbr.rel (0) target = $region45
    $region44: #{critic_forward.1} parent=1 // pred_region
      %71 = dma.done [#allocation6], 256
    $region45: #{critic_forward.1} parent=1 // pred_fallthru
      _
    // Predicated region
    $region46: #{critic_forward.1} parent=1 // pred_check
      _
    $region47: #{critic_forward.1} parent=1 // pred_check_branch
      %73 = sbr.rel (0) target = $region49
    $region48: #{critic_forward.1} parent=1 // pred_region
      %74 = dma.done [#allocation6], 512
    $region49: #{critic_forward.1} parent=1 // pred_fallthru
      _
    %v75 = vld [vmem:[%s0] sm:$0xff]
    %v76 = vld [vmem:[#allocation5] sm:$0xff]
    %v77 = vld [vmem:[#allocation5 + $0x8] sm:$0xff]
    %v78 = vld [vmem:[#allocation3] sm:$0xff]
    %v79 = vld [vmem:[%s3] sm:$0xf]
    %vm80 = vcmask 31744
    %v82 = vsel %vm80, %v78, 0
    %vm84 = vcmask 1043456
    %v86 = vsel %vm84, %v79, 0
    %88 = vmatprep.subr.mxu0 0.0
    %89 = vmatpush1.msra.mxu0 %v86
    %90 = vmatprep.subr.mxu0 0.0
    %91 = vmatpush1.msra.mxu0 0.0
    %92 = vmatprep.subr.mxu0 0.0
    %93 = vmatpush1.msra.mxu0 0.0
    %94 = vmatprep.subr.mxu0 0.0
    %95 = vmatpush1.msra.mxu0 0.0
    %96 = vmatprep.subr.mxu0 0.0
    %97 = vmatpush1.msra.mxu0 0.0
    %98 = vmatprep.subr.mxu0 0.0
    %99 = vmatpush1.msra.mxu0 0.0
    %100 = vmatprep.subr.mxu0 0.0
    %101 = vmatpush1.msra.mxu0 0.0
    %102 = vmatprep.subr.mxu0 0.0
    %103 = vmatpush1.msra.mxu0 0.0
    %104 = vmatprep.subr.mxu0 0.0
    %105 = vmatpush1.msra.mxu0 0.0
    %106 = vmatprep.subr.mxu0 0.0
    %107 = vmatpush1.msra.mxu0 0.0
    %108 = vmatprep.subr.mxu0 0.0
    %109 = vmatpush1.msra.mxu0 0.0
    %110 = vmatprep.subr.mxu0 0.0
    %111 = vmatpush1.msra.mxu0 0.0
    %112 = vmatprep.subr.mxu0 0.0
    %113 = vmatpush1.msra.mxu0 0.0
    %114 = vmatprep.subr.mxu0 0.0
    %115 = vmatpush1.msra.mxu0 0.0
    %116 = vmatprep.subr.mxu0 0.0
    %117 = vmatpush1.msra.mxu0 0.0
    %118 = vmatprep.subr.mxu0 0.0
    %119 = vmatpush1.msra.mxu0 0.0
    %120 = vmatprep.subr.mxu0 0.0
    %121 = vmatpush1.msra.mxu0 0.0
    %122 = vmatprep.subr.mxu0 0.0
    %123 = vmatpush1.msra.mxu0 0.0
    %124 = vmatprep.subr.mxu0 0.0
    %125 = vmatpush1.msra.mxu0 0.0
    %126 = vmatprep.subr.mxu0 0.0
    %127 = vmatpush1.msra.mxu0 0.0
    %128 = vmatprep.subr.mxu0 0.0
    %129 = vmatpush1.msra.mxu0 0.0
    %130 = vmatprep.subr.mxu0 0.0
    %131 = vmatpush1.msra.mxu0 0.0
    %132 = vmatprep.subr.mxu0 0.0
    %133 = vmatpush1.msra.mxu0 0.0
    %134 = vmatprep.subr.mxu0 0.0
    %135 = vmatpush1.msra.mxu0 0.0
    %136 = vmatprep.subr.mxu0 0.0
    %137 = vmatpush1.msra.mxu0 0.0
    %138 = vmatprep.subr.mxu0 0.0
    %139 = vmatpush1.msra.mxu0 0.0
    %140 = vmatprep.subr.mxu0 0.0
    %141 = vmatpush1.msra.mxu0 0.0
    %142 = vmatprep.subr.mxu0 0.0
    %143 = vmatpush1.msra.mxu0 0.0
    %144 = vmatprep.subr.mxu0 0.0
    %145 = vmatpush1.msra.mxu0 0.0
    %146 = vmatprep.subr.mxu0 0.0
    %147 = vmatpush1.msra.mxu0 0.0
    %148 = vmatprep.subr.mxu0 0.0
    %149 = vmatpush1.msra.mxu0 0.0
    %150 = vmatprep.subr.mxu0 0.0
    %151 = vmatpush1.msra.mxu0 0.0
    %152 = vmatprep.mubr.f32.mxu0 0.0
    %153 = vmatmul.mubr.f32.gmra.mrb[0].mxu0 %v82
    %v154 = vpop.f32.mrb[0].mxu0
    %v155 = vadd.f32 0.0, %v154
    %v156 = vpop.f32.mrb[0].mxu0
    %157 = vdwg.mxu0
    %vm158 = vcmask 130048
    %v160 = vsel %vm158, %v75, 0
    %162 = vmatprep.subr.mxu0 0.0
    %163 = vmatpush1.msra.mxu0 %v76
    %164 = vmatprep.subr.mxu0 0.0
    %165 = vmatpush1.msra.mxu0 %v77
    %166 = vmatprep.subr.mxu0 0.0
    %167 = vmatpush1.msra.mxu0 0.0
    %168 = vmatprep.subr.mxu0 0.0
    %169 = vmatpush1.msra.mxu0 0.0
    %170 = vmatprep.subr.mxu0 0.0
    %171 = vmatpush1.msra.mxu0 0.0
    %172 = vmatprep.subr.mxu0 0.0
    %173 = vmatpush1.msra.mxu0 0.0
    %174 = vmatprep.subr.mxu0 0.0
    %175 = vmatpush1.msra.mxu0 0.0
    %176 = vmatprep.subr.mxu0 0.0
    %177 = vmatpush1.msra.mxu0 0.0
    %178 = vmatprep.subr.mxu0 0.0
    %179 = vmatpush1.msra.mxu0 0.0
    %180 = vmatprep.subr.mxu0 0.0
    %181 = vmatpush1.msra.mxu0 0.0
    %182 = vmatprep.subr.mxu0 0.0
    %183 = vmatpush1.msra.mxu0 0.0
    %184 = vmatprep.subr.mxu0 0.0
    %185 = vmatpush1.msra.mxu0 0.0
    %186 = vmatprep.subr.mxu0 0.0
    %187 = vmatpush1.msra.mxu0 0.0
    %188 = vmatprep.subr.mxu0 0.0
    %189 = vmatpush1.msra.mxu0 0.0
    %190 = vmatprep.subr.mxu0 0.0
    %191 = vmatpush1.msra.mxu0 0.0
    %192 = vmatprep.subr.mxu0 0.0
    %193 = vmatpush1.msra.mxu0 0.0
    %194 = vmatprep.subr.mxu0 0.0
    %195 = vmatpush1.msra.mxu0 0.0
    %196 = vmatprep.subr.mxu0 0.0
    %197 = vmatpush1.msra.mxu0 0.0
    %198 = vmatprep.subr.mxu0 0.0
    %199 = vmatpush1.msra.mxu0 0.0
    %200 = vmatprep.subr.mxu0 0.0
    %201 = vmatpush1.msra.mxu0 0.0
    %202 = vmatprep.subr.mxu0 0.0
    %203 = vmatpush1.msra.mxu0 0.0
    %204 = vmatprep.subr.mxu0 0.0
    %205 = vmatpush1.msra.mxu0 0.0
    %206 = vmatprep.subr.mxu0 0.0
    %207 = vmatpush1.msra.mxu0 0.0
    %208 = vmatprep.subr.mxu0 0.0
    %209 = vmatpush1.msra.mxu0 0.0
    %210 = vmatprep.subr.mxu0 0.0
    %211 = vmatpush1.msra.mxu0 0.0
    %212 = vmatprep.subr.mxu0 0.0
    %213 = vmatpush1.msra.mxu0 0.0
    %214 = vmatprep.subr.mxu0 0.0
    %215 = vmatpush1.msra.mxu0 0.0
    %216 = vmatprep.subr.mxu0 0.0
    %217 = vmatpush1.msra.mxu0 0.0
    %218 = vmatprep.subr.mxu0 0.0
    %219 = vmatpush1.msra.mxu0 0.0
    %220 = vmatprep.subr.mxu0 0.0
    %221 = vmatpush1.msra.mxu0 0.0
    %222 = vmatprep.subr.mxu0 0.0
    %223 = vmatpush1.msra.mxu0 0.0
    %224 = vmatprep.subr.mxu0 0.0
    %225 = vmatpush1.msra.mxu0 0.0
    %226 = vmatprep.mubr.f32.mxu0 0.0
    %227 = vmatmul.mubr.f32.gmra.mrb[0].mxu0 %v160
    %v228 = vpop.f32.mrb[0].mxu0
    %v229 = vadd.f32 %v155, %v228
    %v230 = vpop.f32.mrb[0].mxu0
    %231 = vdwg.mxu0
    %v232 = vld [vmem:[%s4] sm:$0x1]
    %v234 = vlaneseq
    %v235 = vshrl.u32 %v234, 7
    %v236 = vsub.s32 0, %v235
    %v237 = vrot.slane %v232, %v236
    %v239 = vadd.f32 %v229, %v237
    %v240 = vmax.f32 %v239, 0.0
    %v241 = vld [vmem:[#allocation7] sm:$0xff]
    %v242 = vld [vmem:[#allocation7 + $0x8] sm:$0xff]
    %v243 = vld [vmem:[#allocation7 + $0x10] sm:$0xff]
    %v244 = vld [vmem:[#allocation7 + $0x18] sm:$0xff]
    %v245 = vld [vmem:[%s6] sm:$0x1]
    %v247 = vlaneseq
    %v248 = vshrl.u32 %v247, 7
    %v249 = vsub.s32 0, %v248
    %v250 = vrot.slane %v245, %v249
    %vm252 = vcmask 261120
    %v254 = vsel %vm252, %v240, 0
    %256 = vmatprep.subr.mxu0 0.0
    %257 = vmatpush1.msra.mxu0 %v241
    %258 = vmatprep.subr.mxu0 0.0
    %259 = vmatpush1.msra.mxu0 %v242
    %260 = vmatprep.subr.mxu0 0.0
    %261 = vmatpush1.msra.mxu0 %v243
    %262 = vmatprep.subr.mxu0 0.0
    %263 = vmatpush1.msra.mxu0 %v244
    %264 = vmatprep.subr.mxu0 0.0
    %265 = vmatpush1.msra.mxu0 0.0
    %266 = vmatprep.subr.mxu0 0.0
    %267 = vmatpush1.msra.mxu0 0.0
    %268 = vmatprep.subr.mxu0 0.0
    %269 = vmatpush1.msra.mxu0 0.0
    %270 = vmatprep.subr.mxu0 0.0
    %271 = vmatpush1.msra.mxu0 0.0
    %272 = vmatprep.subr.mxu0 0.0
    %273 = vmatpush1.msra.mxu0 0.0
    %274 = vmatprep.subr.mxu0 0.0
    %275 = vmatpush1.msra.mxu0 0.0
    %276 = vmatprep.subr.mxu0 0.0
    %277 = vmatpush1.msra.mxu0 0.0
    %278 = vmatprep.subr.mxu0 0.0
    %279 = vmatpush1.msra.mxu0 0.0
    %280 = vmatprep.subr.mxu0 0.0
    %281 = vmatpush1.msra.mxu0 0.0
    %282 = vmatprep.subr.mxu0 0.0
    %283 = vmatpush1.msra.mxu0 0.0
    %284 = vmatprep.subr.mxu0 0.0
    %285 = vmatpush1.msra.mxu0 0.0
    %286 = vmatprep.subr.mxu0 0.0
    %287 = vmatpush1.msra.mxu0 0.0
    %288 = vmatprep.subr.mxu0 0.0
    %289 = vmatpush1.msra.mxu0 0.0
    %290 = vmatprep.subr.mxu0 0.0
    %291 = vmatpush1.msra.mxu0 0.0
    %292 = vmatprep.subr.mxu0 0.0
    %293 = vmatpush1.msra.mxu0 0.0
    %294 = vmatprep.subr.mxu0 0.0
    %295 = vmatpush1.msra.mxu0 0.0
    %296 = vmatprep.subr.mxu0 0.0
    %297 = vmatpush1.msra.mxu0 0.0
    %298 = vmatprep.subr.mxu0 0.0
    %299 = vmatpush1.msra.mxu0 0.0
    %300 = vmatprep.subr.mxu0 0.0
    %301 = vmatpush1.msra.mxu0 0.0
    %302 = vmatprep.subr.mxu0 0.0
    %303 = vmatpush1.msra.mxu0 0.0
    %304 = vmatprep.subr.mxu0 0.0
    %305 = vmatpush1.msra.mxu0 0.0
    %306 = vmatprep.subr.mxu0 0.0
    %307 = vmatpush1.msra.mxu0 0.0
    %308 = vmatprep.subr.mxu0 0.0
    %309 = vmatpush1.msra.mxu0 0.0
    %310 = vmatprep.subr.mxu0 0.0
    %311 = vmatpush1.msra.mxu0 0.0
    %312 = vmatprep.subr.mxu0 0.0
    %313 = vmatpush1.msra.mxu0 0.0
    %314 = vmatprep.subr.mxu0 0.0
    %315 = vmatpush1.msra.mxu0 0.0
    %316 = vmatprep.subr.mxu0 0.0
    %317 = vmatpush1.msra.mxu0 0.0
    %318 = vmatprep.subr.mxu0 0.0
    %319 = vmatpush1.msra.mxu0 0.0
    %320 = vmatprep.mubr.f32.mxu0 0.0
    %321 = vmatmul.mubr.f32.gmra.mrb[0].mxu0 %v254
    %v322 = vpop.f32.mrb[0].mxu0
    %v323 = vadd.f32 %v250, %v322
    %v324 = vpop.f32.mrb[0].mxu0
    %325 = vdwg.mxu0
    %v326 = vmax.f32 %v323, 0.0
    %v327 = vld [vmem:[%s7] sm:$0x1]
    %v329 = vlaneseq
    %v330 = vshrl.u32 %v329, 7
    %v331 = vsub.s32 0, %v330
    %v332 = vrot.slane %v327, %v331
    %v334 = vmul.f32 %v326, %v332
    %v335 = vsel %vm252, %v334, 0.0
    %336 = vadd.xlane.f32.xlu0 %v335
    %v337 = vpop.xlane.xlu0 %336
    %v338 = vld [vmem:[#allocation2] sm:$0x1]
    %v340 = vlaneseq
    %v341 = vshrl.u32 %v340, 7
    %v342 = vsub.s32 0, %v341
    %v343 = vrot.slane %v338, %v342
    %v345 = vadd.f32 %v337, %v343
    %vm346 = vcmask 7168
    %347 = vst.msk [vmem:[#allocation8] sm:$0xff] %vm346, %v345
    // Predicated region
    $region50: #{critic_forward.1} parent=1 // pred_check
      _
    $region51: #{critic_forward.1} parent=1 // pred_check_branch
      %349 = sbr.rel (0) target = $region53
    $region52: #{critic_forward.1} parent=1 // pred_region
      // Predicated region
      $region54: #{critic_forward.1} parent=52 // pred_check
        _
      $region55: #{critic_forward.1} parent=52 // pred_check_branch
        %351 = sbr.rel (0) target = $region57
      $region56: #{critic_forward.1} parent=52 // pred_region
        // Predicated region
        $region58: #{critic_forward.1} parent=56 // pred_check
          _
        $region59: #{critic_forward.1} parent=56 // pred_check_branch
          %353 = sbr.rel target = $region61
        $region60: #{critic_forward.1} parent=56 // pred_region
          // Predicated region
          $region73: #{critic_forward.1} parent=60 // pred_check
            _
          $region74: #{critic_forward.1} parent=60 // pred_check_branch
            %368 = sbr.rel (0) target = $region76
          $region75: #{critic_forward.1} parent=60 // pred_region
            loop: start=0, step=1, limit=1
            $region77: #{critic_forward.1} parent=75 // loop_pre_header
              _
            $region78: #{critic_forward.1} parent=75 // loop_header
              %s371 = sphi 0, %s375
              %p372 = scmp.ge.s32.totalorder %s371, 1
              %s376 = sphi [#allocation8], [#allocation8]
              %s377 = sphi %s9, %s9
            $region79: #{critic_forward.1} parent=75 // loop_header_branch
              %374 = sbr.rel (%p372) target = $region83
            $region80: #{critic_forward.1} parent=75 // loop_body
              %v378 = vld [vmem:[%s376] sm:$0x3]
              %379 = vst [vmem:[%s377] sm:$0x3] %v378
            $region81: #{critic_forward.1} parent=75 // loop_footer
              %s375 = sadd.s32 1, %s371
            $region82: #{critic_forward.1} parent=75 // loop_footer_branch
              %370 = sbr.rel target = $region78
            $region83: #{critic_forward.1} parent=75 // loop_exit
              _
          $region76: #{critic_forward.1} parent=60 // pred_fallthru
            _
        $region61: #{critic_forward.1} parent=56 // pred_fallthru
          _
        // Predicated region
        $region62: #{critic_forward.1} parent=56 // pred_check
          _
        $region63: #{critic_forward.1} parent=56 // pred_check_branch
          %355 = sbr.rel (0) target = $region65
        $region64: #{critic_forward.1} parent=56 // pred_region
          loop: start=0, step=1, limit=1
          $region66: #{critic_forward.1} parent=64 // loop_pre_header
            _
          $region67: #{critic_forward.1} parent=64 // loop_header
            %s358 = sphi 0, %s362
            %p359 = scmp.ge.s32.totalorder %s358, 1
            %s363 = sphi [#allocation8], [#allocation8]
            %s364 = sphi %s9, %s9
          $region68: #{critic_forward.1} parent=64 // loop_header_branch
            %361 = sbr.rel (%p359) target = $region72
          $region69: #{critic_forward.1} parent=64 // loop_body
            %v365 = vld [vmem:[%s363] sm:$0x3]
            %366 = vst [vmem:[%s364] sm:$0x3] %v365
          $region70: #{critic_forward.1} parent=64 // loop_footer
            %s362 = sadd.s32 1, %s358
          $region71: #{critic_forward.1} parent=64 // loop_footer_branch
            %357 = sbr.rel target = $region67
          $region72: #{critic_forward.1} parent=64 // loop_exit
            _
        $region65: #{critic_forward.1} parent=56 // pred_fallthru
          _
      $region57: #{critic_forward.1} parent=52 // pred_fallthru
        _
      %380 = vnop
    $region53: #{critic_forward.1} parent=1 // pred_fallthru
      _
    // Predicated region
    $region84: #{critic_forward.1} parent=1 // pred_check
      _
    $region85: #{critic_forward.1} parent=1 // pred_check_branch
      %382 = sbr.rel (0) target = $region87
    $region86: #{critic_forward.1} parent=1 // pred_region
      _
    $region87: #{critic_forward.1} parent=1 // pred_fallthru
      _
    %383 = vsyncpa [#allocation4], 1
    %384 = vsyncpa [#allocation6], 1

</llo_original>
